<compile_context>
chip_gen: v7x
topology: tpu7x:2x2x1
jax: 0.10.0
libtpu: 0.0.40
codegen_flags: <defaults>
</compile_context>

<pallas_src>
import functools
import math
from typing import NamedTuple, Tuple

import jax
import jax.numpy as jnp
from jax.experimental import pallas as pl
from jax.experimental.pallas import tpu as pltpu


def _round_up(v: int, m: int) -> int:
    return ((v + m - 1) // m) * m


# --------------------------------------------------------------------------- #
# Parameter packing (done once, outside the per-call path)
# --------------------------------------------------------------------------- #
class PackedLorentzParams(NamedTuple):
    w_stack: jax.Array          # (L, ft_p, ft_p) bf16, zero padded
    b_stack: jax.Array          # (L, 1, ft_p)   f32,  zero padded
    relu_flags: Tuple[bool, ...]
    ft_in: int
    ft_in_p: int                # ft_in rounded up to 8 (sublane aligned)
    ft_p: int                   # common lane-dense feature width (mult of 128)
    ft_last: int


def pack_lorentz_params(params, ft_in: int) -> PackedLorentzParams:
    """Pad & stack all layer weights once. params: [(W (ft_prev, ft_d), b (1, ft_d), relu), ...]."""
    dims = [ft_in] + [int(w.shape[1]) for (w, _, _) in params]
    ft_p = _round_up(max(dims), 128)
    ft_in_p = _round_up(ft_in, 8)

    ws, bs = [], []
    for (w, b, _) in params:
        w = jnp.asarray(w, jnp.float32)
        b = jnp.asarray(b, jnp.float32).reshape(1, -1)
        wp = jnp.pad(w, ((0, ft_p - w.shape[0]), (0, ft_p - w.shape[1])))
        bp = jnp.pad(b, ((0, 0), (0, ft_p - b.shape[1])))
        ws.append(wp.astype(jnp.bfloat16))
        bs.append(bp)
    w_stack = jnp.stack(ws)                          # (L, ft_p, ft_p) bf16
    b_stack = jnp.stack(bs)                          # (L, 1, ft_p)   f32
    relu_flags = tuple(bool(f) for (_, _, f) in params)
    return PackedLorentzParams(w_stack, b_stack, relu_flags,
                               ft_in, ft_in_p, ft_p, dims[-1])


# --------------------------------------------------------------------------- #
# Kernel
# --------------------------------------------------------------------------- #
def _fused_lorentz_kernel(x_ref, w_ref, b_ref, o_ref, *,
                          relu_flags, inv_k: float, ft_in_p: int, ft_out_p: int):
    """One row-tile: run every Lorentz FC block with h carried in vregs."""
    ft_p = w_ref.shape[-1]
    # Single (1, ft_p) lane mask for the time coordinate, hoisted out of the loop.
    is_time = jax.lax.broadcasted_iota(jnp.int32, (1, ft_p), 1) == 0

    h = x_ref[...]                                   # (tm, ft_in_p) f32
    # Static, fully-unrolled layer loop -> LLO sees the whole schedule.
    for layer_idx, apply_relu in enumerate(relu_flags):
        if layer_idx == 0:
            # First layer contracts only over the real (sublane-aligned) ft_in.
            w = w_ref[0, :ft_in_p, :]                # (ft_in_p, ft_p) bf16
        else:
            w = w_ref[layer_idx]                     # (ft_p, ft_p) bf16
        y = jnp.dot(h.astype(jnp.bfloat16), w,
                    preferred_element_type=jnp.float32)
        y = y + b_ref[layer_idx]                     # f32 bias add
        if apply_relu:
            # Applying ReLU to the time lane too is harmless: it is overwritten
            # below, and padded lanes are exactly zero (zero-padded W/b).
            y = jnp.maximum(y, 0.0)
        # ||space||^2 via subtraction trick: padded lanes contribute 0, the
        # time lane is subtracted back out. No full-tile masks needed.
        t0 = y[:, :1]
        sq = jnp.sum(y * y, axis=-1, keepdims=True) - t0 * t0
        yt = jnp.sqrt(sq + inv_k)
        h = jnp.where(is_time, yt, y)                # rewrite only the time lane
    o_ref[...] = h[:, :ft_out_p]


def _build_pallas_call(kernel, *, n_p, tm, ft_in_p, ft_p, ft_out_p, n_layers,
                       vmem_limit, weight_mode):
    spec_kwargs = {} if weight_mode is None else {"pipeline_mode": weight_mode}
    return pl.pallas_call(
        kernel,
        out_shape=jax.ShapeDtypeStruct((n_p, ft_out_p), jnp.float32),
        grid_spec=pltpu.PrefetchScalarGridSpec(
            num_scalar_prefetch=0,
            grid=(n_p // tm,),
            in_specs=[
                pl.BlockSpec((tm, ft_in_p), lambda i: (i, 0)),                         # x tile
                pl.BlockSpec((n_layers, ft_p, ft_p), lambda i: (0, 0, 0), **spec_kwargs),  # all W
                pl.BlockSpec((n_layers, 1, ft_p), lambda i: (0, 0, 0), **spec_kwargs),     # all b
            ],
            out_specs=pl.BlockSpec((tm, ft_out_p), lambda i: (i, 0)),
        ),
        compiler_params=pltpu.CompilerParams(
            dimension_semantics=("parallel",),
            vmem_limit_bytes=vmem_limit,
        ),
    )


def lorentz_seq_linear(x, packed: PackedLorentzParams, *, inv_k: float = 1.0):
    """Sequential Lorentz FC blocks, fused into a single Pallas kernel."""
    lead = x.shape[:-1]
    ft_in = x.shape[-1]
    assert ft_in == packed.ft_in, "input feature dim does not match packed params"

    h = x.reshape(-1, ft_in).astype(jnp.float32)
    n = h.shape[0]

    ft_in_p = packed.ft_in_p
    ft_p = packed.ft_p
    ft_out_p = _round_up(packed.ft_last, 128)
    n_layers = len(packed.relu_flags)

    # Row tiling: big tiles amortize per-step overhead, but keep >= 2 grid steps
    # whenever possible so the "parallel" axis shards across both v7x TCs.
    tm = min(512, max(8, _round_up(pl.cdiv(n, 2), 8)))
    n_p = _round_up(n, tm)

    # Cheap padding only: rows to the tile multiple, lanes to ft_in_p (<=7 lanes).
    if (n_p, ft_in_p) != (n, ft_in):
        h = jnp.pad(h, ((0, n_p - n), (0, ft_in_p - ft_in)))

    # Generation-aware VMEM budget (v5e/v6e: 128 MiB, v7x: 64 MiB per core).
    try:
        vmem_phys = int(pltpu.get_tpu_info().vmem_capacity_bytes)
    except Exception:  # pragma: no cover - conservative fallback (v7x per-core)
        vmem_phys = 64 * 1024 * 1024
    vmem_budget = int(vmem_phys * 0.8)

    # Conservative requirement (assumes default double-buffered weights/bias).
    need = (2 * n_layers * ft_p * ft_p * 2           # bf16 weight stack x2 buffers
            + 2 * n_layers * 8 * ft_p * 4            # sublane-padded bias x2 buffers
            + 2 * tm * ft_in_p * 4                   # double-buffered x tiles
            + 2 * tm * ft_out_p * 4                  # double-buffered out tiles
            + 8 * tm * ft_p * 4)                     # headroom for live h/y + spills
    if need > vmem_budget:
        # TODO(synk): add a K-tiled ("arbitrary") grid axis over layers/features
        #             with a pl.when finalize if the fused weights outgrow VMEM.
        raise ValueError(
            f"fused Lorentz weights need ~{need >> 20} MiB VMEM "
            f"(> budget {vmem_budget >> 20} MiB); K-tiling required")

    kernel = functools.partial(
        _fused_lorentz_kernel,
        relu_flags=packed.relu_flags, inv_k=float(inv_k),
        ft_in_p=ft_in_p, ft_out_p=ft_out_p)

    common = dict(n_p=n_p, tm=tm, ft_in_p=ft_in_p, ft_p=ft_p, ft_out_p=ft_out_p,
                  n_layers=n_layers, vmem_limit=vmem_budget)
    try:
        # Weights/bias have a constant index_map: single-buffer them to halve
        # their VMEM footprint (biggest consumer on v7x's 64 MiB VMEM).
        call = _build_pallas_call(kernel, weight_mode=pl.Buffered(1), **common)
        out_p = call(h, packed.w_stack, packed.b_stack)
    except Exception:
        # Fallback if this JAX build rejects single-buffered pipeline mode.
        call = _build_pallas_call(kernel, weight_mode=None, **common)
        out_p = call(h, packed.w_stack, packed.b_stack)

    out = out_p[:n, :packed.ft_last]
    return out.reshape(*lead, packed.ft_last)


# --------------------------------------------------------------------------- #
# Plain-JAX references and init
# --------------------------------------------------------------------------- #
def lorentz_seq_linear_ref(x, params, inv_k=1.0, matmul_dtype=jnp.float32):
    """Reference. matmul_dtype=bf16 mirrors the kernel's MXU operand precision."""
    h = x.reshape(-1, x.shape[-1]).astype(jnp.float32)
    for w, b, apply_relu in params:
        w = jnp.asarray(w, jnp.float32)
        b = jnp.asarray(b, jnp.float32)
        y = jnp.dot(h.astype(matmul_dtype), w.astype(matmul_dtype),
                    preferred_element_type=jnp.float32) + b
        ys = y[:, 1:]
        if apply_relu:
            ys = jnp.maximum(ys, 0.0)
        yt = jnp.sqrt(jnp.sum(ys * ys, axis=-1, keepdims=True) + inv_k)
        h = jnp.concatenate([yt, ys], axis=-1)
    return h.reshape(*x.shape[:-1], h.shape[-1])


def init_params(key, ft_in, layer_dims, act_func="relu"):
    """Deterministic nn.Linear-style uniform init. Returns [(W, b, apply_act), ...].

    Matches LorentzSeqLinear.__init__: block 0 and every non-final block use
    `act_func`; the final block uses LFC_Block's default (Identity) unless it
    is also block 0.
    """
    params = []
    prev = ft_in
    n_layers = len(layer_dims)
    for idx, d in enumerate(layer_dims):
        key, kw, kb = jax.random.split(key, 3)
        bound = 1.0 / math.sqrt(prev)
        w = jax.random.uniform(kw, (prev, d), jnp.float32, -bound, bound)
        b = jax.random.uniform(kb, (1, d), jnp.float32, -bound, bound)
        uses_act = (idx == 0) or (idx < n_layers - 1)
        apply_act = uses_act and (act_func is not None and act_func.lower() == "relu")
        params.append((w, b, apply_act))
        prev = d
    return params


if __name__ == "__main__":
    key = jax.random.PRNGKey(0)

    batch, seq, ft_in = 2, 8, 32      # ft_in includes the Lorentz time coordinate
    layer_dims = [64, 32]

    kx, kp = jax.random.split(key)
    # Build valid hyperboloid inputs: time = sqrt(||space||^2 + 1/k), k = 1.
    space = jax.random.normal(kx, (batch, seq, ft_in - 1), jnp.float32) * 0.5
    time = jnp.sqrt(jnp.sum(space * space, axis=-1, keepdims=True) + 1.0)
    x = jnp.concatenate([time, space], axis=-1)

    params = init_params(kp, ft_in, layer_dims, act_func="relu")
    packed = pack_lorentz_params(params, ft_in)      # packing hoisted out of the call path

    out = lorentz_seq_linear(x, packed)
    out = jax.block_until_ready(out)
    assert out.shape == (batch, seq, layer_dims[-1])

    # Tight check against a reference that matches the kernel's bf16 MXU operands.
    ref_bf16 = lorentz_seq_linear_ref(x, params, matmul_dtype=jnp.bfloat16)
    err_bf16 = float(jnp.max(jnp.abs(out - ref_bf16)))
    assert jnp.allclose(out, ref_bf16, atol=2e-3, rtol=2e-3), err_bf16

    # Loose semantic check against the exact f32 reference (bf16 operand error).
    ref_f32 = lorentz_seq_linear_ref(x, params, matmul_dtype=jnp.float32)
    err_f32 = float(jnp.max(jnp.abs(out - ref_f32)))
    assert jnp.allclose(out, ref_f32, atol=1e-1, rtol=1e-1), err_f32

    print("KERNEL_OK")
</pallas_src>

<mosaic_0001>
module attributes {stable_mosaic.version = 11 : i64} {
  func.func @_fused_lorentz_kernel(%arg0: i32, %arg1: memref<8x32xf32, #tpu.memory_space<vmem>>, %arg2: memref<2x128x128xbf16, #tpu.memory_space<vmem>>, %arg3: memref<2x1x128xf32, #tpu.memory_space<vmem>>, %arg4: memref<8x128xf32, #tpu.memory_space<vmem>>) attributes {dimension_semantics = [#tpu.dimension_semantics<parallel>], iteration_bounds = array<i64: 2>, scalar_prefetch = 0 : i64, scratch_operands = 0 : i64, tpu.core_type = #tpu.core_type<tc>, window_params = [{transform_indices = @transform_0, window_bounds = array<i64: 8, 32>}, {pipeline_mode = #tpu.pipeline_mode<synchronous>, transform_indices = @transform_1, window_bounds = array<i64: 2, 128, 128>}, {pipeline_mode = #tpu.pipeline_mode<synchronous>, transform_indices = @transform_2, window_bounds = array<i64: 2, 1, 128>}, {transform_indices = @transform_3, window_bounds = array<i64: 8, 128>}]} {
    %0 = tpu.iota {dimensions = array<i32: 1>} : vector<1x128xi32>
    %c0_i32 = arith.constant 0 : i32
    %1 = vector.broadcast %c0_i32 : i32 to vector<1x128xi32>
    %2 = arith.cmpi eq, %0, %1 : vector<1x128xi32>
    %c0 = arith.constant 0 : index
    %c0_0 = arith.constant 0 : index
    %3 = vector.load %arg1[%c0, %c0_0] : memref<8x32xf32, #tpu.memory_space<vmem>>, vector<8x32xf32>
    %c0_1 = arith.constant 0 : index
    %c0_2 = arith.constant 0 : index
    %c0_3 = arith.constant 0 : index
    %4 = vector.load %arg2[%c0_1, %c0_2, %c0_3] : memref<2x128x128xbf16, #tpu.memory_space<vmem>>, vector<1x32x128xbf16>
    %5 = vector.shape_cast %4 : vector<1x32x128xbf16> to vector<32x128xbf16>
    %6 = arith.truncf %3 : vector<8x32xf32> to vector<8x32xbf16>
    %cst = arith.constant dense<0.000000e+00> : vector<8x128xf32>
    %7 = tpu.matmul %6, %5, %cst {dimension_numbers = #tpu.dot_dimension_numbers<[1], [0], [0], [1], [0, 0, 1, 1], [], []>} : vector<8x32xbf16>, vector<32x128xbf16>, vector<8x128xf32> -> vector<8x128xf32>
    %c0_4 = arith.constant 0 : index
    %c0_5 = arith.constant 0 : index
    %c0_6 = arith.constant 0 : index
    %8 = vector.load %arg3[%c0_4, %c0_5, %c0_6] : memref<2x1x128xf32, #tpu.memory_space<vmem>>, vector<1x1x128xf32>
    %9 = vector.shape_cast %8 : vector<1x1x128xf32> to vector<1x128xf32>
    %10 = vector.broadcast %9 : vector<1x128xf32> to vector<8x128xf32>
    %11 = arith.addf %7, %10 : vector<8x128xf32>
    %cst_7 = arith.constant 0.000000e+00 : f32
    %12 = vector.broadcast %cst_7 : f32 to vector<8x128xf32>
    %13 = arith.maximumf %11, %12 : vector<8x128xf32>
    %14 = vector.extract_strided_slice %13 {offsets = [0, 0], sizes = [8, 1], strides = [1, 1]} : vector<8x128xf32> to vector<8x1xf32>
    %15 = arith.mulf %13, %13 : vector<8x128xf32>
    %cst_8 = arith.constant dense<0.000000e+00> : vector<8xf32>
    %16 = vector.multi_reduction <add>, %15, %cst_8 [1] : vector<8x128xf32> to vector<8xf32>
    %17 = vector.shape_cast %16 : vector<8xf32> to vector<8x1xf32>
    %18 = arith.mulf %14, %14 : vector<8x1xf32>
    %19 = arith.subf %17, %18 : vector<8x1xf32>
    %cst_9 = arith.constant 1.000000e+00 : f32
    %20 = vector.broadcast %cst_9 : f32 to vector<8x1xf32>
    %21 = arith.addf %19, %20 : vector<8x1xf32>
    %22 = math.sqrt %21 : vector<8x1xf32>
    %23 = vector.shape_cast %2 : vector<1x128xi1> to vector<1x128xi1>
    %24 = vector.broadcast %23 : vector<1x128xi1> to vector<8x128xi1>
    %25 = vector.shape_cast %22 : vector<8x1xf32> to vector<8x1xf32>
    %26 = vector.broadcast %25 : vector<8x1xf32> to vector<8x128xf32>
    %27 = arith.select %24, %26, %13 : vector<8x128xi1>, vector<8x128xf32>
    %c1 = arith.constant 1 : index
    %c0_10 = arith.constant 0 : index
    %c0_11 = arith.constant 0 : index
    %28 = vector.load %arg2[%c1, %c0_10, %c0_11] : memref<2x128x128xbf16, #tpu.memory_space<vmem>>, vector<1x128x128xbf16>
    %29 = vector.shape_cast %28 : vector<1x128x128xbf16> to vector<128x128xbf16>
    %30 = arith.truncf %27 : vector<8x128xf32> to vector<8x128xbf16>
    %cst_12 = arith.constant dense<0.000000e+00> : vector<8x128xf32>
    %31 = tpu.matmul %30, %29, %cst_12 {dimension_numbers = #tpu.dot_dimension_numbers<[1], [0], [0], [1], [0, 0, 1, 1], [], []>} : vector<8x128xbf16>, vector<128x128xbf16>, vector<8x128xf32> -> vector<8x128xf32>
    %c1_13 = arith.constant 1 : index
    %c0_14 = arith.constant 0 : index
    %c0_15 = arith.constant 0 : index
    %32 = vector.load %arg3[%c1_13, %c0_14, %c0_15] : memref<2x1x128xf32, #tpu.memory_space<vmem>>, vector<1x1x128xf32>
    %33 = vector.shape_cast %32 : vector<1x1x128xf32> to vector<1x128xf32>
    %34 = vector.broadcast %33 : vector<1x128xf32> to vector<8x128xf32>
    %35 = arith.addf %31, %34 : vector<8x128xf32>
    %36 = vector.extract_strided_slice %35 {offsets = [0, 0], sizes = [8, 1], strides = [1, 1]} : vector<8x128xf32> to vector<8x1xf32>
    %37 = arith.mulf %35, %35 : vector<8x128xf32>
    %cst_16 = arith.constant dense<0.000000e+00> : vector<8xf32>
    %38 = vector.multi_reduction <add>, %37, %cst_16 [1] : vector<8x128xf32> to vector<8xf32>
    %39 = vector.shape_cast %38 : vector<8xf32> to vector<8x1xf32>
    %40 = arith.mulf %36, %36 : vector<8x1xf32>
    %41 = arith.subf %39, %40 : vector<8x1xf32>
    %cst_17 = arith.constant 1.000000e+00 : f32
    %42 = vector.broadcast %cst_17 : f32 to vector<8x1xf32>
    %43 = arith.addf %41, %42 : vector<8x1xf32>
    %44 = math.sqrt %43 : vector<8x1xf32>
    %45 = vector.shape_cast %2 : vector<1x128xi1> to vector<1x128xi1>
    %46 = vector.broadcast %45 : vector<1x128xi1> to vector<8x128xi1>
    %47 = vector.shape_cast %44 : vector<8x1xf32> to vector<8x1xf32>
    %48 = vector.broadcast %47 : vector<8x1xf32> to vector<8x128xf32>
    %49 = arith.select %46, %48, %35 : vector<8x128xi1>, vector<8x128xf32>
    %c0_18 = arith.constant 0 : index
    %c0_19 = arith.constant 0 : index
    %50 = vector.load %arg4[%c0_18, %c0_19] : memref<8x128xf32, #tpu.memory_space<vmem>>, vector<8x128xf32>
    tpu.vector_store %arg4[%c0_18, %c0_19], %49 {strides = array<i32>} : memref<8x128xf32, #tpu.memory_space<vmem>>, vector<8x128xf32>,
    return
  }
  func.func @transform_0(%arg0: i32) -> (i32, i32) {
    %c0_i32 = arith.constant 0 : i32
    %c0_i32_0 = arith.constant 0 : i32
    return %arg0, %c0_i32 : i32, i32
  }
  func.func @transform_1(%arg0: i32) -> (i32, i32, i32) {
    %c0_i32 = arith.constant 0 : i32
    %c0_i32_0 = arith.constant 0 : i32
    %c0_i32_1 = arith.constant 0 : i32
    %c0_i32_2 = arith.constant 0 : i32
    return %c0_i32, %c0_i32_0, %c0_i32_1 : i32, i32, i32
  }
  func.func @transform_2(%arg0: i32) -> (i32, i32, i32) {
    %c0_i32 = arith.constant 0 : i32
    %c0_i32_0 = arith.constant 0 : i32
    %c0_i32_1 = arith.constant 0 : i32
    %c0_i32_2 = arith.constant 0 : i32
    return %c0_i32, %c0_i32_0, %c0_i32_1 : i32, i32, i32
  }
  func.func @transform_3(%arg0: i32) -> (i32, i32) {
    %c0_i32 = arith.constant 0 : i32
    %c0_i32_0 = arith.constant 0 : i32
    return %arg0, %c0_i32 : i32, i32
  }
}

module attributes {stable_mosaic.version = 11 : i64} {
  func.func @_fused_lorentz_kernel(%arg0: i32, %arg1: memref<8x32xf32, #tpu.memory_space<vmem>>, %arg2: memref<2x128x128xbf16, #tpu.memory_space<vmem>>, %arg3: memref<2x1x128xf32, #tpu.memory_space<vmem>>, %arg4: memref<8x128xf32, #tpu.memory_space<vmem>>) attributes {dimension_semantics = [#tpu.dimension_semantics<parallel>], iteration_bounds = array<i64: 2>, scalar_prefetch = 0 : i64, scratch_operands = 0 : i64, tpu.core_type = #tpu.core_type<tc>, window_params = [{transform_indices = @transform_0, window_bounds = array<i64: 8, 32>}, {pipeline_mode = #tpu.pipeline_mode<synchronous>, transform_indices = @transform_1, window_bounds = array<i64: 2, 128, 128>}, {pipeline_mode = #tpu.pipeline_mode<synchronous>, transform_indices = @transform_2, window_bounds = array<i64: 2, 1, 128>}, {transform_indices = @transform_3, window_bounds = array<i64: 8, 128>}]} {
    %0 = tpu.iota {dimensions = array<i32: 1>} : vector<1x128xi32>
    %c0_i32 = arith.constant 0 : i32
    %1 = vector.broadcast %c0_i32 : i32 to vector<1x128xi32>
    %2 = arith.cmpi eq, %0, %1 : vector<1x128xi32>
    %c0 = arith.constant 0 : index
    %c0_0 = arith.constant 0 : index
    %3 = vector.load %arg1[%c0, %c0_0] : memref<8x32xf32, #tpu.memory_space<vmem>>, vector<8x32xf32>
    %c0_1 = arith.constant 0 : index
    %c0_2 = arith.constant 0 : index
    %c0_3 = arith.constant 0 : index
    %4 = vector.load %arg2[%c0_1, %c0_2, %c0_3] : memref<2x128x128xbf16, #tpu.memory_space<vmem>>, vector<1x32x128xbf16>
    %5 = vector.shape_cast %4 : vector<1x32x128xbf16> to vector<32x128xbf16>
    %6 = arith.truncf %3 : vector<8x32xf32> to vector<8x32xbf16>
    %cst = arith.constant dense<0.000000e+00> : vector<8x128xf32>
    %7 = tpu.matmul %6, %5, %cst {dimension_numbers = #tpu.dot_dimension_numbers<[1], [0], [0], [1], [0, 0, 1, 1], [], []>} : vector<8x32xbf16>, vector<32x128xbf16>, vector<8x128xf32> -> vector<8x128xf32>
    %c0_4 = arith.constant 0 : index
    %c0_5 = arith.constant 0 : index
    %c0_6 = arith.constant 0 : index
    %8 = vector.load %arg3[%c0_4, %c0_5, %c0_6] : memref<2x1x128xf32, #tpu.memory_space<vmem>>, vector<1x1x128xf32>
    %9 = vector.shape_cast %8 : vector<1x1x128xf32> to vector<1x128xf32>
    %10 = vector.broadcast %9 : vector<1x128xf32> to vector<8x128xf32>
    %11 = arith.addf %7, %10 : vector<8x128xf32>
    %cst_7 = arith.constant 0.000000e+00 : f32
    %12 = vector.broadcast %cst_7 : f32 to vector<8x128xf32>
    %13 = arith.maximumf %11, %12 : vector<8x128xf32>
    %14 = vector.extract_strided_slice %13 {offsets = [0, 0], sizes = [8, 1], strides = [1, 1]} : vector<8x128xf32> to vector<8x1xf32>
    %15 = arith.mulf %13, %13 : vector<8x128xf32>
    %cst_8 = arith.constant dense<0.000000e+00> : vector<8xf32>
    %16 = vector.multi_reduction <add>, %15, %cst_8 [1] : vector<8x128xf32> to vector<8xf32>
    %17 = vector.shape_cast %16 : vector<8xf32> to vector<8x1xf32>
    %18 = arith.mulf %14, %14 : vector<8x1xf32>
    %19 = arith.subf %17, %18 : vector<8x1xf32>
    %cst_9 = arith.constant 1.000000e+00 : f32
    %20 = vector.broadcast %cst_9 : f32 to vector<8x1xf32>
    %21 = arith.addf %19, %20 : vector<8x1xf32>
    %22 = math.sqrt %21 : vector<8x1xf32>
    %23 = vector.shape_cast %2 : vector<1x128xi1> to vector<1x128xi1>
    %24 = vector.broadcast %23 : vector<1x128xi1> to vector<8x128xi1>
    %25 = vector.shape_cast %22 : vector<8x1xf32> to vector<8x1xf32>
    %26 = vector.broadcast %25 : vector<8x1xf32> to vector<8x128xf32>
    %27 = arith.select %24, %26, %13 : vector<8x128xi1>, vector<8x128xf32>
    %c1 = arith.constant 1 : index
    %c0_10 = arith.constant 0 : index
    %c0_11 = arith.constant 0 : index
    %28 = vector.load %arg2[%c1, %c0_10, %c0_11] : memref<2x128x128xbf16, #tpu.memory_space<vmem>>, vector<1x128x128xbf16>
    %29 = vector.shape_cast %28 : vector<1x128x128xbf16> to vector<128x128xbf16>
    %30 = arith.truncf %27 : vector<8x128xf32> to vector<8x128xbf16>
    %cst_12 = arith.constant dense<0.000000e+00> : vector<8x128xf32>
    %31 = tpu.matmul %30, %29, %cst_12 {dimension_numbers = #tpu.dot_dimension_numbers<[1], [0], [0], [1], [0, 0, 1, 1], [], []>} : vector<8x128xbf16>, vector<128x128xbf16>, vector<8x128xf32> -> vector<8x128xf32>
    %c1_13 = arith.constant 1 : index
    %c0_14 = arith.constant 0 : index
    %c0_15 = arith.constant 0 : index
    %32 = vector.load %arg3[%c1_13, %c0_14, %c0_15] : memref<2x1x128xf32, #tpu.memory_space<vmem>>, vector<1x1x128xf32>
    %33 = vector.shape_cast %32 : vector<1x1x128xf32> to vector<1x128xf32>
    %34 = vector.broadcast %33 : vector<1x128xf32> to vector<8x128xf32>
    %35 = arith.addf %31, %34 : vector<8x128xf32>
    %36 = vector.extract_strided_slice %35 {offsets = [0, 0], sizes = [8, 1], strides = [1, 1]} : vector<8x128xf32> to vector<8x1xf32>
    %37 = arith.mulf %35, %35 : vector<8x128xf32>
    %cst_16 = arith.constant dense<0.000000e+00> : vector<8xf32>
    %38 = vector.multi_reduction <add>, %37, %cst_16 [1] : vector<8x128xf32> to vector<8xf32>
    %39 = vector.shape_cast %38 : vector<8xf32> to vector<8x1xf32>
    %40 = arith.mulf %36, %36 : vector<8x1xf32>
    %41 = arith.subf %39, %40 : vector<8x1xf32>
    %cst_17 = arith.constant 1.000000e+00 : f32
    %42 = vector.broadcast %cst_17 : f32 to vector<8x1xf32>
    %43 = arith.addf %41, %42 : vector<8x1xf32>
    %44 = math.sqrt %43 : vector<8x1xf32>
    %45 = vector.shape_cast %2 : vector<1x128xi1> to vector<1x128xi1>
    %46 = vector.broadcast %45 : vector<1x128xi1> to vector<8x128xi1>
    %47 = vector.shape_cast %44 : vector<8x1xf32> to vector<8x1xf32>
    %48 = vector.broadcast %47 : vector<8x1xf32> to vector<8x128xf32>
    %49 = arith.select %46, %48, %35 : vector<8x128xi1>, vector<8x128xf32>
    %c0_18 = arith.constant 0 : index
    %c0_19 = arith.constant 0 : index
    %50 = vector.load %arg4[%c0_18, %c0_19] : memref<8x128xf32, #tpu.memory_space<vmem>>, vector<8x128xf32>
    tpu.vector_store %arg4[%c0_18, %c0_19], %49 {strides = array<i32>} : memref<8x128xf32, #tpu.memory_space<vmem>>, vector<8x128xf32>,
    return
  }
  func.func @transform_0(%arg0: i32) -> (i32, i32) {
    %c0_i32 = arith.constant 0 : i32
    %c0_i32_0 = arith.constant 0 : i32
    return %arg0, %c0_i32 : i32, i32
  }
  func.func @transform_1(%arg0: i32) -> (i32, i32, i32) {
    %c0_i32 = arith.constant 0 : i32
    %c0_i32_0 = arith.constant 0 : i32
    %c0_i32_1 = arith.constant 0 : i32
    %c0_i32_2 = arith.constant 0 : i32
    return %c0_i32, %c0_i32_0, %c0_i32_1 : i32, i32, i32
  }
  func.func @transform_2(%arg0: i32) -> (i32, i32, i32) {
    %c0_i32 = arith.constant 0 : i32
    %c0_i32_0 = arith.constant 0 : i32
    %c0_i32_1 = arith.constant 0 : i32
    %c0_i32_2 = arith.constant 0 : i32
    return %c0_i32, %c0_i32_0, %c0_i32_1 : i32, i32, i32
  }
  func.func @transform_3(%arg0: i32) -> (i32, i32) {
    %c0_i32 = arith.constant 0 : i32
    %c0_i32_0 = arith.constant 0 : i32
    return %arg0, %c0_i32 : i32, i32
  }
}

</mosaic_0001>

<llo_original>
// kernel: tpu_custom_call.1
$region0: #{tpu_custom_call.1}
  #allocation0 [shape = 'u32[]', space=smem, size = 0x4, offset = 0x4, fixed_abs, tag = 'smem constant byte address 0x4 - core index']
  #allocation1 [shape = 'u32[144,128]{1,0:T(1,128)}', space=vmem, size = 0x12000, scoped, tag = 'internal scratch']
  %s0 = inlined_call_operand.hbm [shape: f32[16,32], index: 0, kind: input, shape index: {}]
  %s1 = inlined_call_operand.hbm [shape: bf16[2,128,128], index: 1, kind: input, shape index: {}]
  %s2 = inlined_call_operand.vmem [shape: f32[2,1,128], index: 2, kind: input, shape index: {}]
  %s3 = inlined_call_operand.hbm [shape: f32[16,128], index: 3, kind: output, shape index: {}]
  %s4 = sld [smem:[#allocation0]]
  $region53: #{tpu_custom_call.1} parent=0
    _
  %s6 = ssub.s32 1, %s4
  %s7 = scalar_select 0, %s6, %s4
  $region1: #{tpu_custom_call.1} parent=0
    #allocation2 [shape = 'u8[8192]{0}', space=vmem, size = 0x2000, scoped, tag = 'input window, operand 0']
    #allocation3 [shape = 's32[2]{0}', space=sflag, size = 0x8, scoped, tag = 'scoped memory for tpu_custom_call.1']
    #allocation4 [shape = 's32[2]{0}', space=sflag, size = 0x8, scoped, tag = 'scoped memory for tpu_custom_call.1']
    #allocation5 [shape = 'u8[65536]{0}', space=vmem, size = 0x10000, scoped, tag = 'input window, operand 1, single buffered']
    #allocation6 [shape = 's32[1]{0}', space=sflag, size = 0x4, scoped, tag = 'scoped memory for tpu_custom_call.1']
    #allocation7 [shape = 'u8[8192]{0}', space=vmem, size = 0x2000, scoped, tag = 'output window, operand 0']
    %8 = vsyncpa [#allocation3], 0
    %s9 = scalar_lea.sflag [#allocation3], 1
    %10 = vsyncpa %s9, 0
    %11 = vsyncpa [#allocation6], 0
    %12 = vsyncpa [#allocation4], 0
    %s13 = scalar_lea.sflag [#allocation4], 1
    %14 = vsyncpa %s13, 0
    loop: start=0, step=1, limit=4
    $region2: #{tpu_custom_call.1} parent=1 // loop_pre_header
      _
    $region3: #{tpu_custom_call.1} parent=1 // loop_header
      %s16 = sphi 0, %s20
      %p17 = scmp.ge.s32.totalorder %s16, 4
      %s26 = sphi 0, %s28
      %s29 = sphi 0, %s26
      %s30 = sphi 0, %s29
      %s46 = sphi 0, %s30
      %s50 = sphi 0, %s50
      %s52 = sphi 0, %s50
      %s53 = sphi 0, %s52
      %s67 = sphi 0, %s53
      %s71 = sphi 0, %s71
      %s73 = sphi 0, %s71
      %s74 = sphi 0, %s73
      %s88 = sphi 0, %s74
      %s94 = sphi 0, %s96
      %s97 = sphi 0, %s94
      %s98 = sphi 0, %s97
      %s114 = sphi 0, %s98
    $region4: #{tpu_custom_call.1} parent=1 // loop_header_branch
      %19 = sbr.rel (%p17) target = $region8
    $region5: #{tpu_custom_call.1} parent=1 // loop_body
      %s21 = ssub.s32 %s16, 1
      %s22 = ssub.s32 %s16, 2
      %s23 = sadd.s32 %s16, 1
      %s24 = ssub.s32 %s16, %s23
      %p25 = scmp.eq.s32.totalorder %s24, 0
      %s27 = sadd.s32 %s26, 1
      %s28 = scalar_select %p25, %s26, %s27
      %p31 = pneg %p25
      %p32 = scmp.eq.s32.totalorder %s16, 1
      %p33 = por %p31, %p32
      %p34 = scmp.ne.s32.totalorder %s26, %s29
      %p35 = scmp.eq.s32.totalorder %s16, 0
      %p36 = por %p34, %p35
      %p37 = scmp.ne.s32.totalorder %s26, %s29
      %p38 = scmp.eq.s32.totalorder %s21, 1
      %p39 = por %p37, %p38
      %p40 = scmp.ne.s32.totalorder %s29, %s30
      %p41 = scmp.eq.s32.totalorder %s21, 0
      %p42 = por %p40, %p41
      %p43 = scmp.ne.s32.totalorder %s29, %s30
      %p44 = scmp.eq.s32.totalorder %s22, 1
      %p45 = por %p43, %p44
      %p47 = scmp.ne.s32.totalorder %s30, %s46
      %p48 = scmp.eq.s32.totalorder %s22, 0
      %p49 = por %p47, %p48
      %s51 = sadd.s32 %s50, 1
      %p54 = scmp.eq.s32.totalorder %s16, 1
      %p55 = scmp.ne.s32.totalorder %s50, %s52
      %p56 = scmp.eq.s32.totalorder %s16, 0
      %p57 = por %p55, %p56
      %p58 = scmp.ne.s32.totalorder %s50, %s52
      %p59 = scmp.eq.s32.totalorder %s21, 1
      %p60 = por %p58, %p59
      %p61 = scmp.ne.s32.totalorder %s52, %s53
      %p62 = scmp.eq.s32.totalorder %s21, 0
      %p63 = por %p61, %p62
      %p64 = scmp.ne.s32.totalorder %s52, %s53
      %p65 = scmp.eq.s32.totalorder %s22, 1
      %p66 = por %p64, %p65
      %p68 = scmp.ne.s32.totalorder %s53, %s67
      %p69 = scmp.eq.s32.totalorder %s22, 0
      %p70 = por %p68, %p69
      %s72 = sadd.s32 %s71, 1
      %p75 = scmp.eq.s32.totalorder %s16, 1
      %p76 = scmp.ne.s32.totalorder %s71, %s73
      %p77 = scmp.eq.s32.totalorder %s16, 0
      %p78 = por %p76, %p77
      %p79 = scmp.ne.s32.totalorder %s71, %s73
      %p80 = scmp.eq.s32.totalorder %s21, 1
      %p81 = por %p79, %p80
      %p82 = scmp.ne.s32.totalorder %s73, %s74
      %p83 = scmp.eq.s32.totalorder %s21, 0
      %p84 = por %p82, %p83
      %p85 = scmp.ne.s32.totalorder %s73, %s74
      %p86 = scmp.eq.s32.totalorder %s22, 1
      %p87 = por %p85, %p86
      %p89 = scmp.ne.s32.totalorder %s74, %s88
      %p90 = scmp.eq.s32.totalorder %s22, 0
      %p91 = por %p89, %p90
      %s92 = ssub.s32 %s16, %s23
      %p93 = scmp.eq.s32.totalorder %s92, 0
      %s95 = sadd.s32 %s94, 1
      %s96 = scalar_select %p93, %s94, %s95
      %p99 = pneg %p93
      %p100 = scmp.eq.s32.totalorder %s16, 1
      %p101 = por %p99, %p100
      %p102 = scmp.ne.s32.totalorder %s94, %s97
      %p103 = scmp.eq.s32.totalorder %s16, 0
      %p104 = por %p102, %p103
      %p105 = scmp.ne.s32.totalorder %s94, %s97
      %p106 = scmp.eq.s32.totalorder %s21, 1
      %p107 = por %p105, %p106
      %p108 = scmp.ne.s32.totalorder %s97, %s98
      %p109 = scmp.eq.s32.totalorder %s21, 0
      %p110 = por %p108, %p109
      %p111 = scmp.ne.s32.totalorder %s97, %s98
      %p112 = scmp.eq.s32.totalorder %s22, 1
      %p113 = por %p111, %p112
      %p115 = scmp.ne.s32.totalorder %s98, %s114
      %p116 = scmp.eq.s32.totalorder %s22, 0
      %p117 = por %p115, %p116
      %p118 = scmp.le.s32.totalorder 1, %s16
      %p119 = scmp.lt.s32.totalorder %s16, 3
      %p120 = pnand %p118, %p119
      %p121 = pneg %p120
      // Predicated region
      $region9: #{tpu_custom_call.1} parent=5 // pred_check
        _
      $region10: #{tpu_custom_call.1} parent=5 // pred_check_branch
        %123 = sbr.rel (%p120) target = $region12
      $region11: #{tpu_custom_call.1} parent=5 // pred_region
        %s124 = ssub.s32 %s16, 1
        // Predicated region
        $region13: #{tpu_custom_call.1} parent=11 // pred_check
          %p125 = pneg %p63
        $region14: #{tpu_custom_call.1} parent=11 // pred_check_branch
          %127 = sbr.rel (%p125) target = $region16
        $region15: #{tpu_custom_call.1} parent=11 // pred_region
          %s129 = ssub.s32 2048, 2048
          %130 = vsyncadd [#allocation6], %s129
          %s131 = sshll.u32 [#allocation5], 4
          %s132 = int_to_ptr.vmem [resolvable:$true] %s131
          %137 = dma.hbm_to_vmem [thread:$0]  %s1, 2048, %s132, [#allocation6], 64, 64, 4
        $region16: #{tpu_custom_call.1} parent=11 // pred_fallthru
          _
        // Predicated region
        $region17: #{tpu_custom_call.1} parent=11 // pred_check
          %p138 = pneg %p84
        $region18: #{tpu_custom_call.1} parent=11 // pred_check_branch
          %140 = sbr.rel (%p138) target = $region20
        $region19: #{tpu_custom_call.1} parent=11 // pred_region
          _
        $region20: #{tpu_custom_call.1} parent=11 // pred_fallthru
          _
      $region12: #{tpu_custom_call.1} parent=5 // pred_fallthru
        _
      %p141 = scmp.lt.s32.totalorder %s16, 2
      // Predicated region
      $region21: #{tpu_custom_call.1} parent=5 // pred_check
        %p142 = pneg %p141
      $region22: #{tpu_custom_call.1} parent=5 // pred_check_branch
        %144 = sbr.rel (%p142) target = $region24
      $region23: #{tpu_custom_call.1} parent=5 // pred_region
        // Predicated region
        $region25: #{tpu_custom_call.1} parent=23 // pred_check
          %p145 = pneg %p36
        $region26: #{tpu_custom_call.1} parent=23 // pred_check_branch
          %147 = sbr.rel (%p145) target = $region28
        $region27: #{tpu_custom_call.1} parent=23 // pred_region
          %s148 = sand.u32 %s26, 1
          %s149 = scalar_lea.sflag [#allocation3], %s148
          %s150 = sand.u32 %s26, 1
          %s151 = smul.addr %s150, 8
          %s152 = scalar_lea.vmem [#allocation2], %s151
          %s154 = ssub.s32 128, 128
          %155 = vsyncadd %s149, %s154
          %s156 = smul.addr %s16, 128
          %s157 = scalar_lea.hbm %s0, %s156
          %s159 = sshll.u32 %s152, 4
          %s160 = int_to_ptr.vmem [resolvable:$true] %s159
          %162 = dma.hbm_to_vmem [thread:$0]  %s157, 128, %s160, %s149
        $region28: #{tpu_custom_call.1} parent=23 // pred_fallthru
          _
      $region24: #{tpu_custom_call.1} parent=5 // pred_fallthru
        _
      %p163 = scmp.le.s32.totalorder 1, %s16
      %p164 = scmp.lt.s32.totalorder %s16, 3
      %p165 = pnand %p163, %p164
      %p166 = pneg %p165
      // Predicated region
      $region29: #{tpu_custom_call.1} parent=5 // pred_check
        _
      $region30: #{tpu_custom_call.1} parent=5 // pred_check_branch
        %168 = sbr.rel (%p165) target = $region32
      $region31: #{tpu_custom_call.1} parent=5 // pred_region
        %s169 = ssub.s32 %s16, 1
        %s170 = sand.u32 %s29, 1
        %s171 = scalar_lea.sflag [#allocation3], %s170
        %s172 = sand.u32 %s29, 1
        %s173 = smul.addr %s172, 8
        %s174 = scalar_lea.vmem [#allocation2], %s173
        // Predicated region
        $region33: #{tpu_custom_call.1} parent=31 // pred_check
          %p175 = pneg %p42
        $region34: #{tpu_custom_call.1} parent=31 // pred_check_branch
          %177 = sbr.rel (%p175) target = $region36
        $region35: #{tpu_custom_call.1} parent=31 // pred_region
          %178 = dma.done %s171, 128
        $region36: #{tpu_custom_call.1} parent=31 // pred_fallthru
          _
        // Predicated region
        $region37: #{tpu_custom_call.1} parent=31 // pred_check
          %p179 = pneg %p63
        $region38: #{tpu_custom_call.1} parent=31 // pred_check_branch
          %181 = sbr.rel (%p179) target = $region40
        $region39: #{tpu_custom_call.1} parent=31 // pred_region
          %182 = dma.done [#allocation6], 2048
        $region40: #{tpu_custom_call.1} parent=31 // pred_fallthru
          _
        %s183 = sand.u32 %s29, 1
        %s184 = scalar_lea.sflag [#allocation3], %s183
        %s185 = sand.u32 %s29, 1
        %s186 = smul.addr %s185, 8
        %s187 = scalar_lea.vmem [#allocation2], %s186
        %p188 = pneg %p42
        %p189 = pneg %p39
        %p190 = pneg %p63
        %p191 = pneg %p60
        %p192 = pneg %p84
        %p193 = pneg %p81
        %p194 = pneg %p110
        %p195 = pneg %p107
        %s196 = sand.u32 %s97, 1
        %s197 = scalar_lea.sflag [#allocation4], %s196
        %s198 = sand.u32 %s97, 1
        %s199 = smul.addr %s198, 8
        %s200 = scalar_lea.vmem [#allocation7], %s199
        %v202 = vlaneseq
        %v203 = vand.u32 %v202, 127
        %vm204 = vcmp.eq.s32.totalorder %v203, 0
        %v205 = vld [vmem:[%s174] sm:$0xff]
        %v206 = vld [vmem:[#allocation5] sm:$0xf]
        %v207 = vld [vmem:[#allocation5 + $0x4] sm:$0xf]
        %v208 = vld [vmem:[#allocation5 + $0x8] sm:$0xf]
        %v209 = vld [vmem:[#allocation5 + $0xc] sm:$0xf]
        %v210 = vpack.c.bf16 %v205, %v205
        %v211 = vld [vmem:[%s2] sm:$0x1]
        %v213 = vlaneseq
        %v214 = vshrl.u32 %v213, 7
        %v215 = vsub.s32 0, %v214
        %v216 = vrot.slane %v211, %v215
        %v222 = vunpack.c.l.b16 %v206
        %v223 = vunpack.c.l.b16 %v207
        %v224 = vunpack.c.l.b16 %v208
        %v225 = vunpack.c.l.b16 %v209
        %v226 = vpack.c.b16 %v223, %v222
        %v227 = vpack.c.b16 %v225, %v224
        %vm230 = vcmask 261120
        %v232 = vsel %vm230, %v210, 0
        %234 = vmatprep.subr.bf16.mxu0 0
        %235 = vmatpush1.bf16.msra.mxu0 %v226
        %236 = vmatprep.subr.bf16.mxu0 0
        %237 = vmatpush1.bf16.msra.mxu0 %v227
        %238 = vmatprep.subr.bf16.mxu0 0
        %239 = vmatpush1.bf16.msra.mxu0 0
        %240 = vmatprep.subr.bf16.mxu0 0
        %241 = vmatpush1.bf16.msra.mxu0 0
        %242 = vmatprep.subr.bf16.mxu0 0
        %243 = vmatpush1.bf16.msra.mxu0 0
        %244 = vmatprep.subr.bf16.mxu0 0
        %245 = vmatpush1.bf16.msra.mxu0 0
        %246 = vmatprep.subr.bf16.mxu0 0
        %247 = vmatpush1.bf16.msra.mxu0 0
        %248 = vmatprep.subr.bf16.mxu0 0
        %249 = vmatpush1.bf16.msra.mxu0 0
        %250 = vmatprep.subr.bf16.mxu0 0
        %251 = vmatpush1.bf16.msra.mxu0 0
        %252 = vmatprep.subr.bf16.mxu0 0
        %253 = vmatpush1.bf16.msra.mxu0 0
        %254 = vmatprep.subr.bf16.mxu0 0
        %255 = vmatpush1.bf16.msra.mxu0 0
        %256 = vmatprep.subr.bf16.mxu0 0
        %257 = vmatpush1.bf16.msra.mxu0 0
        %258 = vmatprep.subr.bf16.mxu0 0
        %259 = vmatpush1.bf16.msra.mxu0 0
        %260 = vmatprep.subr.bf16.mxu0 0
        %261 = vmatpush1.bf16.msra.mxu0 0
        %262 = vmatprep.subr.bf16.mxu0 0
        %263 = vmatpush1.bf16.msra.mxu0 0
        %264 = vmatprep.subr.bf16.mxu0 0
        %265 = vmatpush1.bf16.msra.mxu0 0
        %266 = vmatprep.mubr.bf16.mxu0 0
        %267 = vmatmul.mubr.bf16.gmra.mrb[0].mxu0 %v232
        %v268 = vpop.f32.mrb[0].mxu0
        %v269 = vadd.f32 %v216, %v268
        %v270 = vpop.f32.mrb[0].mxu0
        %v271 = vpop.f32.mrb[0].mxu0
        %v272 = vpop.f32.mrb[0].mxu0
        %273 = vdwg.mxu0
        %v274 = vmax.f32 %v269, 0.0
        %v275 = vmul.f32 %v274, %v274
        %276 = vadd.xlane.f32.xlu0 %v275
        %v277 = vpop.xlane.xlu0 %276
        %v278 = vsub.f32 %v277, %v275
        %v279 = vadd.f32 %v278, 1.0
        %v280 = vrsqrt.pop %v279
        %v281 = vmul.f32 %v279, %v280
        %vm282 = vcmp.eq.f32.partialorder %v279, inf
        %v283 = vsel %vm282, %v279, %v281
        %vm284 = vcmp.eq.f32.partialorder %v279, 0.0
        %v285 = vand.u32 %v279, 2147483648
        %v286 = vsel %vm284, %v285, %v283
        %v287 = vsel %vm204, 1, 0
        %vm288 = vcmp.eq.s32.totalorder %v287, 1
        %290 = vset.pattern.permute.xlu0 0
        %291 = vperm.xlu0 %290, %v286
        %v292 = vpop.permute.xlu0 %291
        %v294 = vsel %vm288, %v292, %v274
        %s295 = scalar_lea.vmem [#allocation5], 64
        %v296 = vld [vmem:[%s295] sm:$0xf]
        %v297 = vld [vmem:[%s295 + $0x4] sm:$0xf]
        %v298 = vld [vmem:[%s295 + $0x8] sm:$0xf]
        %v299 = vld [vmem:[%s295 + $0xc] sm:$0xf]
        %v300 = vld [vmem:[%s295 + $0x10] sm:$0xf]
        %v301 = vld [vmem:[%s295 + $0x14] sm:$0xf]
        %v302 = vld [vmem:[%s295 + $0x18] sm:$0xf]
        %v303 = vld [vmem:[%s295 + $0x1c] sm:$0xf]
        %v304 = vld [vmem:[%s295 + $0x20] sm:$0xf]
        %v305 = vld [vmem:[%s295 + $0x24] sm:$0xf]
        %v306 = vld [vmem:[%s295 + $0x28] sm:$0xf]
        %v307 = vld [vmem:[%s295 + $0x2c] sm:$0xf]
        %v308 = vld [vmem:[%s295 + $0x30] sm:$0xf]
        %v309 = vld [vmem:[%s295 + $0x34] sm:$0xf]
        %v310 = vld [vmem:[%s295 + $0x38] sm:$0xf]
        %v311 = vld [vmem:[%s295 + $0x3c] sm:$0xf]
        %v312 = vpack.c.bf16 %v294, %v294
        %s313 = scalar_lea.vmem %s2, 1
        %v314 = vld [vmem:[%s313] sm:$0x1]
        %v316 = vlaneseq
        %v317 = vshrl.u32 %v316, 7
        %v318 = vsub.s32 0, %v317
        %v319 = vrot.slane %v314, %v318
        %v337 = vunpack.c.l.b16 %v296
        %v338 = vunpack.c.l.b16 %v297
        %v339 = vunpack.c.l.b16 %v298
        %v340 = vunpack.c.l.b16 %v299
        %v341 = vunpack.c.l.b16 %v300
        %v342 = vunpack.c.l.b16 %v301
        %v343 = vunpack.c.l.b16 %v302
        %v344 = vunpack.c.l.b16 %v303
        %v345 = vunpack.c.l.b16 %v304
        %v346 = vunpack.c.l.b16 %v305
        %v347 = vunpack.c.l.b16 %v306
        %v348 = vunpack.c.l.b16 %v307
        %v349 = vunpack.c.l.b16 %v308
        %v350 = vunpack.c.l.b16 %v309
        %v351 = vunpack.c.l.b16 %v310
        %v352 = vunpack.c.l.b16 %v311
        %v353 = vpack.c.b16 %v338, %v337
        %v354 = vpack.c.b16 %v340, %v339
        %v355 = vpack.c.b16 %v342, %v341
        %v356 = vpack.c.b16 %v344, %v343
        %v357 = vpack.c.b16 %v346, %v345
        %v358 = vpack.c.b16 %v348, %v347
        %v359 = vpack.c.b16 %v350, %v349
        %v360 = vpack.c.b16 %v352, %v351
        %369 = vmatprep.subr.bf16.mxu0 0
        %370 = vmatpush1.bf16.msra.mxu0 %v353
        %371 = vmatprep.subr.bf16.mxu0 0
        %372 = vmatpush1.bf16.msra.mxu0 %v354
        %373 = vmatprep.subr.bf16.mxu0 0
        %374 = vmatpush1.bf16.msra.mxu0 %v355
        %375 = vmatprep.subr.bf16.mxu0 0
        %376 = vmatpush1.bf16.msra.mxu0 %v356
        %377 = vmatprep.subr.bf16.mxu0 0
        %378 = vmatpush1.bf16.msra.mxu0 %v357
        %379 = vmatprep.subr.bf16.mxu0 0
        %380 = vmatpush1.bf16.msra.mxu0 %v358
        %381 = vmatprep.subr.bf16.mxu0 0
        %382 = vmatpush1.bf16.msra.mxu0 %v359
        %383 = vmatprep.subr.bf16.mxu0 0
        %384 = vmatpush1.bf16.msra.mxu0 %v360
        %385 = vmatprep.subr.bf16.mxu0 0
        %386 = vmatpush1.bf16.msra.mxu0 0
        %387 = vmatprep.subr.bf16.mxu0 0
        %388 = vmatpush1.bf16.msra.mxu0 0
        %389 = vmatprep.subr.bf16.mxu0 0
        %390 = vmatpush1.bf16.msra.mxu0 0
        %391 = vmatprep.subr.bf16.mxu0 0
        %392 = vmatpush1.bf16.msra.mxu0 0
        %393 = vmatprep.subr.bf16.mxu0 0
        %394 = vmatpush1.bf16.msra.mxu0 0
        %395 = vmatprep.subr.bf16.mxu0 0
        %396 = vmatpush1.bf16.msra.mxu0 0
        %397 = vmatprep.subr.bf16.mxu0 0
        %398 = vmatpush1.bf16.msra.mxu0 0
        %399 = vmatprep.subr.bf16.mxu0 0
        %400 = vmatpush1.bf16.msra.mxu0 0
        %401 = vmatprep.mubr.bf16.mxu0 0
        %402 = vmatmul.mubr.bf16.gmra.mrb[0].mxu0 %v312
        %v403 = vpop.f32.mrb[0].mxu0
        %v404 = vadd.f32 %v319, %v403
        %v405 = vpop.f32.mrb[0].mxu0
        %v406 = vpop.f32.mrb[0].mxu0
        %v407 = vpop.f32.mrb[0].mxu0
        %408 = vdwg.mxu0
        %v409 = vmul.f32 %v404, %v404
        %410 = vadd.xlane.f32.xlu0 %v409
        %v411 = vpop.xlane.xlu0 %410
        %v412 = vsub.f32 %v411, %v409
        %v413 = vadd.f32 %v412, 1.0
        %v414 = vrsqrt.pop %v413
        %v415 = vmul.f32 %v413, %v414
        %vm416 = vcmp.eq.f32.partialorder %v413, inf
        %v417 = vsel %vm416, %v413, %v415
        %vm418 = vcmp.eq.f32.partialorder %v413, 0.0
        %v419 = vand.u32 %v413, 2147483648
        %v420 = vsel %vm418, %v419, %v417
        %422 = vset.pattern.permute.xlu0 0
        %423 = vperm.xlu0 %422, %v420
        %v424 = vpop.permute.xlu0 %423
        %v426 = vsel %vm288, %v424, %v404
        %427 = vst [vmem:[%s200] sm:$0xff] %v426
        %s428 = sand.u32 %s97, 1
        %s429 = scalar_lea.sflag [#allocation4], %s428
        %s430 = sand.u32 %s97, 1
        %s431 = smul.addr %s430, 8
        %s432 = scalar_lea.vmem [#allocation7], %s431
        // Predicated region
        $region41: #{tpu_custom_call.1} parent=31 // pred_check
          %p433 = pneg %p107
        $region42: #{tpu_custom_call.1} parent=31 // pred_check_branch
          %435 = sbr.rel (%p433) target = $region44
        $region43: #{tpu_custom_call.1} parent=31 // pred_region
          %s437 = ssub.s32 128, 128
          %438 = vsyncadd %s429, %s437
          %s439 = smul.addr %s21, 128
          %s440 = scalar_lea.hbm %s3, %s439
          %s442 = sshll.u32 %s432, 4
          %s443 = int_to_ptr.vmem [resolvable:$true] %s442
          %445 = dma.vmem_to_hbm [thread:$0]  %s443, 128, %s440, %s429
        $region44: #{tpu_custom_call.1} parent=31 // pred_fallthru
          _
      $region32: #{tpu_custom_call.1} parent=5 // pred_fallthru
        _
      %p446 = scmp.le.s32.totalorder 2, %s16
      // Predicated region
      $region45: #{tpu_custom_call.1} parent=5 // pred_check
        %p447 = pneg %p446
      $region46: #{tpu_custom_call.1} parent=5 // pred_check_branch
        %449 = sbr.rel (%p447) target = $region48
      $region47: #{tpu_custom_call.1} parent=5 // pred_region
        %s450 = ssub.s32 %s16, 2
        // Predicated region
        $region49: #{tpu_custom_call.1} parent=47 // pred_check
          %p451 = pneg %p113
        $region50: #{tpu_custom_call.1} parent=47 // pred_check_branch
          %453 = sbr.rel (%p451) target = $region52
        $region51: #{tpu_custom_call.1} parent=47 // pred_region
          %s454 = sand.u32 %s98, 1
          %s455 = scalar_lea.sflag [#allocation4], %s454
          %s456 = sand.u32 %s98, 1
          %s457 = smul.addr %s456, 8
          %s458 = scalar_lea.vmem [#allocation7], %s457
          %459 = dma.done %s455, 128
        $region52: #{tpu_custom_call.1} parent=47 // pred_fallthru
          _
      $region48: #{tpu_custom_call.1} parent=5 // pred_fallthru
        _
    $region6: #{tpu_custom_call.1} parent=1 // loop_footer
      %s20 = sadd.s32 1, %s16
    $region7: #{tpu_custom_call.1} parent=1 // loop_footer_branch
      %15 = sbr.rel target = $region3
    $region8: #{tpu_custom_call.1} parent=1 // loop_exit
      _
    %460 = vsyncpa [#allocation3], 1
    %s461 = scalar_lea.sflag [#allocation3], 1
    %462 = vsyncpa %s461, 1
    %463 = vsyncpa [#allocation6], 1
    %464 = vsyncpa [#allocation4], 1
    %s465 = scalar_lea.sflag [#allocation4], 1
    %466 = vsyncpa %s465, 1

// kernel: tpu_custom_call.1
$region0: #{tpu_custom_call.1}
  #allocation0 [shape = 'u32[]', space=smem, size = 0x4, offset = 0x4, fixed_abs, tag = 'smem constant byte address 0x4 - core index']
  #allocation1 [shape = 'u32[144,128]{1,0:T(1,128)}', space=vmem, size = 0x12000, scoped, tag = 'internal scratch']
  %s0 = inlined_call_operand.hbm [shape: f32[16,32], index: 0, kind: input, shape index: {}]
  %s1 = inlined_call_operand.hbm [shape: bf16[2,128,128], index: 1, kind: input, shape index: {}]
  %s2 = inlined_call_operand.vmem [shape: f32[2,1,128], index: 2, kind: input, shape index: {}]
  %s3 = inlined_call_operand.hbm [shape: f32[16,128], index: 3, kind: output, shape index: {}]
  %s4 = sld [smem:[#allocation0]]
  $region53: #{tpu_custom_call.1} parent=0
    _
  %s6 = ssub.s32 1, %s4
  %s7 = scalar_select 0, %s6, %s4
  $region1: #{tpu_custom_call.1} parent=0
    #allocation2 [shape = 'u8[8192]{0}', space=vmem, size = 0x2000, scoped, tag = 'input window, operand 0']
    #allocation3 [shape = 's32[2]{0}', space=sflag, size = 0x8, scoped, tag = 'scoped memory for tpu_custom_call.1']
    #allocation4 [shape = 's32[2]{0}', space=sflag, size = 0x8, scoped, tag = 'scoped memory for tpu_custom_call.1']
    #allocation5 [shape = 'u8[65536]{0}', space=vmem, size = 0x10000, scoped, tag = 'input window, operand 1, single buffered']
    #allocation6 [shape = 's32[1]{0}', space=sflag, size = 0x4, scoped, tag = 'scoped memory for tpu_custom_call.1']
    #allocation7 [shape = 'u8[8192]{0}', space=vmem, size = 0x2000, scoped, tag = 'output window, operand 0']
    %8 = vsyncpa [#allocation3], 0
    %s9 = scalar_lea.sflag [#allocation3], 1
    %10 = vsyncpa %s9, 0
    %11 = vsyncpa [#allocation6], 0
    %12 = vsyncpa [#allocation4], 0
    %s13 = scalar_lea.sflag [#allocation4], 1
    %14 = vsyncpa %s13, 0
    loop: start=0, step=1, limit=4
    $region2: #{tpu_custom_call.1} parent=1 // loop_pre_header
      _
    $region3: #{tpu_custom_call.1} parent=1 // loop_header
      %s16 = sphi 0, %s20
      %p17 = scmp.ge.s32.totalorder %s16, 4
      %s26 = sphi 0, %s28
      %s29 = sphi 0, %s26
      %s30 = sphi 0, %s29
      %s46 = sphi 0, %s30
      %s50 = sphi 0, %s50
      %s52 = sphi 0, %s50
      %s53 = sphi 0, %s52
      %s67 = sphi 0, %s53
      %s71 = sphi 0, %s71
      %s73 = sphi 0, %s71
      %s74 = sphi 0, %s73
      %s88 = sphi 0, %s74
      %s94 = sphi 0, %s96
      %s97 = sphi 0, %s94
      %s98 = sphi 0, %s97
      %s114 = sphi 0, %s98
    $region4: #{tpu_custom_call.1} parent=1 // loop_header_branch
      %19 = sbr.rel (%p17) target = $region8
    $region5: #{tpu_custom_call.1} parent=1 // loop_body
      %s21 = ssub.s32 %s16, 1
      %s22 = ssub.s32 %s16, 2
      %s23 = sadd.s32 %s16, 1
      %s24 = ssub.s32 %s16, %s23
      %p25 = scmp.eq.s32.totalorder %s24, 0
      %s27 = sadd.s32 %s26, 1
      %s28 = scalar_select %p25, %s26, %s27
      %p31 = pneg %p25
      %p32 = scmp.eq.s32.totalorder %s16, 1
      %p33 = por %p31, %p32
      %p34 = scmp.ne.s32.totalorder %s26, %s29
      %p35 = scmp.eq.s32.totalorder %s16, 0
      %p36 = por %p34, %p35
      %p37 = scmp.ne.s32.totalorder %s26, %s29
      %p38 = scmp.eq.s32.totalorder %s21, 1
      %p39 = por %p37, %p38
      %p40 = scmp.ne.s32.totalorder %s29, %s30
      %p41 = scmp.eq.s32.totalorder %s21, 0
      %p42 = por %p40, %p41
      %p43 = scmp.ne.s32.totalorder %s29, %s30
      %p44 = scmp.eq.s32.totalorder %s22, 1
      %p45 = por %p43, %p44
      %p47 = scmp.ne.s32.totalorder %s30, %s46
      %p48 = scmp.eq.s32.totalorder %s22, 0
      %p49 = por %p47, %p48
      %s51 = sadd.s32 %s50, 1
      %p54 = scmp.eq.s32.totalorder %s16, 1
      %p55 = scmp.ne.s32.totalorder %s50, %s52
      %p56 = scmp.eq.s32.totalorder %s16, 0
      %p57 = por %p55, %p56
      %p58 = scmp.ne.s32.totalorder %s50, %s52
      %p59 = scmp.eq.s32.totalorder %s21, 1
      %p60 = por %p58, %p59
      %p61 = scmp.ne.s32.totalorder %s52, %s53
      %p62 = scmp.eq.s32.totalorder %s21, 0
      %p63 = por %p61, %p62
      %p64 = scmp.ne.s32.totalorder %s52, %s53
      %p65 = scmp.eq.s32.totalorder %s22, 1
      %p66 = por %p64, %p65
      %p68 = scmp.ne.s32.totalorder %s53, %s67
      %p69 = scmp.eq.s32.totalorder %s22, 0
      %p70 = por %p68, %p69
      %s72 = sadd.s32 %s71, 1
      %p75 = scmp.eq.s32.totalorder %s16, 1
      %p76 = scmp.ne.s32.totalorder %s71, %s73
      %p77 = scmp.eq.s32.totalorder %s16, 0
      %p78 = por %p76, %p77
      %p79 = scmp.ne.s32.totalorder %s71, %s73
      %p80 = scmp.eq.s32.totalorder %s21, 1
      %p81 = por %p79, %p80
      %p82 = scmp.ne.s32.totalorder %s73, %s74
      %p83 = scmp.eq.s32.totalorder %s21, 0
      %p84 = por %p82, %p83
      %p85 = scmp.ne.s32.totalorder %s73, %s74
      %p86 = scmp.eq.s32.totalorder %s22, 1
      %p87 = por %p85, %p86
      %p89 = scmp.ne.s32.totalorder %s74, %s88
      %p90 = scmp.eq.s32.totalorder %s22, 0
      %p91 = por %p89, %p90
      %s92 = ssub.s32 %s16, %s23
      %p93 = scmp.eq.s32.totalorder %s92, 0
      %s95 = sadd.s32 %s94, 1
      %s96 = scalar_select %p93, %s94, %s95
      %p99 = pneg %p93
      %p100 = scmp.eq.s32.totalorder %s16, 1
      %p101 = por %p99, %p100
      %p102 = scmp.ne.s32.totalorder %s94, %s97
      %p103 = scmp.eq.s32.totalorder %s16, 0
      %p104 = por %p102, %p103
      %p105 = scmp.ne.s32.totalorder %s94, %s97
      %p106 = scmp.eq.s32.totalorder %s21, 1
      %p107 = por %p105, %p106
      %p108 = scmp.ne.s32.totalorder %s97, %s98
      %p109 = scmp.eq.s32.totalorder %s21, 0
      %p110 = por %p108, %p109
      %p111 = scmp.ne.s32.totalorder %s97, %s98
      %p112 = scmp.eq.s32.totalorder %s22, 1
      %p113 = por %p111, %p112
      %p115 = scmp.ne.s32.totalorder %s98, %s114
      %p116 = scmp.eq.s32.totalorder %s22, 0
      %p117 = por %p115, %p116
      %p118 = scmp.le.s32.totalorder 1, %s16
      %p119 = scmp.lt.s32.totalorder %s16, 3
      %p120 = pnand %p118, %p119
      %p121 = pneg %p120
      // Predicated region
      $region9: #{tpu_custom_call.1} parent=5 // pred_check
        _
      $region10: #{tpu_custom_call.1} parent=5 // pred_check_branch
        %123 = sbr.rel (%p120) target = $region12
      $region11: #{tpu_custom_call.1} parent=5 // pred_region
        %s124 = ssub.s32 %s16, 1
        // Predicated region
        $region13: #{tpu_custom_call.1} parent=11 // pred_check
          %p125 = pneg %p63
        $region14: #{tpu_custom_call.1} parent=11 // pred_check_branch
          %127 = sbr.rel (%p125) target = $region16
        $region15: #{tpu_custom_call.1} parent=11 // pred_region
          %s129 = ssub.s32 2048, 2048
          %130 = vsyncadd [#allocation6], %s129
          %s131 = sshll.u32 [#allocation5], 4
          %s132 = int_to_ptr.vmem [resolvable:$true] %s131
          %137 = dma.hbm_to_vmem [thread:$0]  %s1, 2048, %s132, [#allocation6], 64, 64, 4
        $region16: #{tpu_custom_call.1} parent=11 // pred_fallthru
          _
        // Predicated region
        $region17: #{tpu_custom_call.1} parent=11 // pred_check
          %p138 = pneg %p84
        $region18: #{tpu_custom_call.1} parent=11 // pred_check_branch
          %140 = sbr.rel (%p138) target = $region20
        $region19: #{tpu_custom_call.1} parent=11 // pred_region
          _
        $region20: #{tpu_custom_call.1} parent=11 // pred_fallthru
          _
      $region12: #{tpu_custom_call.1} parent=5 // pred_fallthru
        _
      %p141 = scmp.lt.s32.totalorder %s16, 2
      // Predicated region
      $region21: #{tpu_custom_call.1} parent=5 // pred_check
        %p142 = pneg %p141
      $region22: #{tpu_custom_call.1} parent=5 // pred_check_branch
        %144 = sbr.rel (%p142) target = $region24
      $region23: #{tpu_custom_call.1} parent=5 // pred_region
        // Predicated region
        $region25: #{tpu_custom_call.1} parent=23 // pred_check
          %p145 = pneg %p36
        $region26: #{tpu_custom_call.1} parent=23 // pred_check_branch
          %147 = sbr.rel (%p145) target = $region28
        $region27: #{tpu_custom_call.1} parent=23 // pred_region
          %s148 = sand.u32 %s26, 1
          %s149 = scalar_lea.sflag [#allocation3], %s148
          %s150 = sand.u32 %s26, 1
          %s151 = smul.addr %s150, 8
          %s152 = scalar_lea.vmem [#allocation2], %s151
          %s154 = ssub.s32 128, 128
          %155 = vsyncadd %s149, %s154
          %s156 = smul.addr %s16, 128
          %s157 = scalar_lea.hbm %s0, %s156
          %s159 = sshll.u32 %s152, 4
          %s160 = int_to_ptr.vmem [resolvable:$true] %s159
          %162 = dma.hbm_to_vmem [thread:$0]  %s157, 128, %s160, %s149
        $region28: #{tpu_custom_call.1} parent=23 // pred_fallthru
          _
      $region24: #{tpu_custom_call.1} parent=5 // pred_fallthru
        _
      %p163 = scmp.le.s32.totalorder 1, %s16
      %p164 = scmp.lt.s32.totalorder %s16, 3
      %p165 = pnand %p163, %p164
      %p166 = pneg %p165
      // Predicated region
      $region29: #{tpu_custom_call.1} parent=5 // pred_check
        _
      $region30: #{tpu_custom_call.1} parent=5 // pred_check_branch
        %168 = sbr.rel (%p165) target = $region32
      $region31: #{tpu_custom_call.1} parent=5 // pred_region
        %s169 = ssub.s32 %s16, 1
        %s170 = sand.u32 %s29, 1
        %s171 = scalar_lea.sflag [#allocation3], %s170
        %s172 = sand.u32 %s29, 1
        %s173 = smul.addr %s172, 8
        %s174 = scalar_lea.vmem [#allocation2], %s173
        // Predicated region
        $region33: #{tpu_custom_call.1} parent=31 // pred_check
          %p175 = pneg %p42
        $region34: #{tpu_custom_call.1} parent=31 // pred_check_branch
          %177 = sbr.rel (%p175) target = $region36
        $region35: #{tpu_custom_call.1} parent=31 // pred_region
          %178 = dma.done %s171, 128
        $region36: #{tpu_custom_call.1} parent=31 // pred_fallthru
          _
        // Predicated region
        $region37: #{tpu_custom_call.1} parent=31 // pred_check
          %p179 = pneg %p63
        $region38: #{tpu_custom_call.1} parent=31 // pred_check_branch
          %181 = sbr.rel (%p179) target = $region40
        $region39: #{tpu_custom_call.1} parent=31 // pred_region
          %182 = dma.done [#allocation6], 2048
        $region40: #{tpu_custom_call.1} parent=31 // pred_fallthru
          _
        %s183 = sand.u32 %s29, 1
        %s184 = scalar_lea.sflag [#allocation3], %s183
        %s185 = sand.u32 %s29, 1
        %s186 = smul.addr %s185, 8
        %s187 = scalar_lea.vmem [#allocation2], %s186
        %p188 = pneg %p42
        %p189 = pneg %p39
        %p190 = pneg %p63
        %p191 = pneg %p60
        %p192 = pneg %p84
        %p193 = pneg %p81
        %p194 = pneg %p110
        %p195 = pneg %p107
        %s196 = sand.u32 %s97, 1
        %s197 = scalar_lea.sflag [#allocation4], %s196
        %s198 = sand.u32 %s97, 1
        %s199 = smul.addr %s198, 8
        %s200 = scalar_lea.vmem [#allocation7], %s199
        %v202 = vlaneseq
        %v203 = vand.u32 %v202, 127
        %vm204 = vcmp.eq.s32.totalorder %v203, 0
        %v205 = vld [vmem:[%s174] sm:$0xff]
        %v206 = vld [vmem:[#allocation5] sm:$0xf]
        %v207 = vld [vmem:[#allocation5 + $0x4] sm:$0xf]
        %v208 = vld [vmem:[#allocation5 + $0x8] sm:$0xf]
        %v209 = vld [vmem:[#allocation5 + $0xc] sm:$0xf]
        %v210 = vpack.c.bf16 %v205, %v205
        %v211 = vld [vmem:[%s2] sm:$0x1]
        %v213 = vlaneseq
        %v214 = vshrl.u32 %v213, 7
        %v215 = vsub.s32 0, %v214
        %v216 = vrot.slane %v211, %v215
        %v222 = vunpack.c.l.b16 %v206
        %v223 = vunpack.c.l.b16 %v207
        %v224 = vunpack.c.l.b16 %v208
        %v225 = vunpack.c.l.b16 %v209
        %v226 = vpack.c.b16 %v223, %v222
        %v227 = vpack.c.b16 %v225, %v224
        %vm230 = vcmask 261120
        %v232 = vsel %vm230, %v210, 0
        %234 = vmatprep.subr.bf16.mxu0 0
        %235 = vmatpush1.bf16.msra.mxu0 %v226
        %236 = vmatprep.subr.bf16.mxu0 0
        %237 = vmatpush1.bf16.msra.mxu0 %v227
        %238 = vmatprep.subr.bf16.mxu0 0
        %239 = vmatpush1.bf16.msra.mxu0 0
        %240 = vmatprep.subr.bf16.mxu0 0
        %241 = vmatpush1.bf16.msra.mxu0 0
        %242 = vmatprep.subr.bf16.mxu0 0
        %243 = vmatpush1.bf16.msra.mxu0 0
        %244 = vmatprep.subr.bf16.mxu0 0
        %245 = vmatpush1.bf16.msra.mxu0 0
        %246 = vmatprep.subr.bf16.mxu0 0
        %247 = vmatpush1.bf16.msra.mxu0 0
        %248 = vmatprep.subr.bf16.mxu0 0
        %249 = vmatpush1.bf16.msra.mxu0 0
        %250 = vmatprep.subr.bf16.mxu0 0
        %251 = vmatpush1.bf16.msra.mxu0 0
        %252 = vmatprep.subr.bf16.mxu0 0
        %253 = vmatpush1.bf16.msra.mxu0 0
        %254 = vmatprep.subr.bf16.mxu0 0
        %255 = vmatpush1.bf16.msra.mxu0 0
        %256 = vmatprep.subr.bf16.mxu0 0
        %257 = vmatpush1.bf16.msra.mxu0 0
        %258 = vmatprep.subr.bf16.mxu0 0
        %259 = vmatpush1.bf16.msra.mxu0 0
        %260 = vmatprep.subr.bf16.mxu0 0
        %261 = vmatpush1.bf16.msra.mxu0 0
        %262 = vmatprep.subr.bf16.mxu0 0
        %263 = vmatpush1.bf16.msra.mxu0 0
        %264 = vmatprep.subr.bf16.mxu0 0
        %265 = vmatpush1.bf16.msra.mxu0 0
        %266 = vmatprep.mubr.bf16.mxu0 0
        %267 = vmatmul.mubr.bf16.gmra.mrb[0].mxu0 %v232
        %v268 = vpop.f32.mrb[0].mxu0
        %v269 = vadd.f32 %v216, %v268
        %v270 = vpop.f32.mrb[0].mxu0
        %v271 = vpop.f32.mrb[0].mxu0
        %v272 = vpop.f32.mrb[0].mxu0
        %273 = vdwg.mxu0
        %v274 = vmax.f32 %v269, 0.0
        %v275 = vmul.f32 %v274, %v274
        %276 = vadd.xlane.f32.xlu0 %v275
        %v277 = vpop.xlane.xlu0 %276
        %v278 = vsub.f32 %v277, %v275
        %v279 = vadd.f32 %v278, 1.0
        %v280 = vrsqrt.pop %v279
        %v281 = vmul.f32 %v279, %v280
        %vm282 = vcmp.eq.f32.partialorder %v279, inf
        %v283 = vsel %vm282, %v279, %v281
        %vm284 = vcmp.eq.f32.partialorder %v279, 0.0
        %v285 = vand.u32 %v279, 2147483648
        %v286 = vsel %vm284, %v285, %v283
        %v287 = vsel %vm204, 1, 0
        %vm288 = vcmp.eq.s32.totalorder %v287, 1
        %290 = vset.pattern.permute.xlu0 0
        %291 = vperm.xlu0 %290, %v286
        %v292 = vpop.permute.xlu0 %291
        %v294 = vsel %vm288, %v292, %v274
        %s295 = scalar_lea.vmem [#allocation5], 64
        %v296 = vld [vmem:[%s295] sm:$0xf]
        %v297 = vld [vmem:[%s295 + $0x4] sm:$0xf]
        %v298 = vld [vmem:[%s295 + $0x8] sm:$0xf]
        %v299 = vld [vmem:[%s295 + $0xc] sm:$0xf]
        %v300 = vld [vmem:[%s295 + $0x10] sm:$0xf]
        %v301 = vld [vmem:[%s295 + $0x14] sm:$0xf]
        %v302 = vld [vmem:[%s295 + $0x18] sm:$0xf]
        %v303 = vld [vmem:[%s295 + $0x1c] sm:$0xf]
        %v304 = vld [vmem:[%s295 + $0x20] sm:$0xf]
        %v305 = vld [vmem:[%s295 + $0x24] sm:$0xf]
        %v306 = vld [vmem:[%s295 + $0x28] sm:$0xf]
        %v307 = vld [vmem:[%s295 + $0x2c] sm:$0xf]
        %v308 = vld [vmem:[%s295 + $0x30] sm:$0xf]
        %v309 = vld [vmem:[%s295 + $0x34] sm:$0xf]
        %v310 = vld [vmem:[%s295 + $0x38] sm:$0xf]
        %v311 = vld [vmem:[%s295 + $0x3c] sm:$0xf]
        %v312 = vpack.c.bf16 %v294, %v294
        %s313 = scalar_lea.vmem %s2, 1
        %v314 = vld [vmem:[%s313] sm:$0x1]
        %v316 = vlaneseq
        %v317 = vshrl.u32 %v316, 7
        %v318 = vsub.s32 0, %v317
        %v319 = vrot.slane %v314, %v318
        %v337 = vunpack.c.l.b16 %v296
        %v338 = vunpack.c.l.b16 %v297
        %v339 = vunpack.c.l.b16 %v298
        %v340 = vunpack.c.l.b16 %v299
        %v341 = vunpack.c.l.b16 %v300
        %v342 = vunpack.c.l.b16 %v301
        %v343 = vunpack.c.l.b16 %v302
        %v344 = vunpack.c.l.b16 %v303
        %v345 = vunpack.c.l.b16 %v304
        %v346 = vunpack.c.l.b16 %v305
        %v347 = vunpack.c.l.b16 %v306
        %v348 = vunpack.c.l.b16 %v307
        %v349 = vunpack.c.l.b16 %v308
        %v350 = vunpack.c.l.b16 %v309
        %v351 = vunpack.c.l.b16 %v310
        %v352 = vunpack.c.l.b16 %v311
        %v353 = vpack.c.b16 %v338, %v337
        %v354 = vpack.c.b16 %v340, %v339
        %v355 = vpack.c.b16 %v342, %v341
        %v356 = vpack.c.b16 %v344, %v343
        %v357 = vpack.c.b16 %v346, %v345
        %v358 = vpack.c.b16 %v348, %v347
        %v359 = vpack.c.b16 %v350, %v349
        %v360 = vpack.c.b16 %v352, %v351
        %369 = vmatprep.subr.bf16.mxu0 0
        %370 = vmatpush1.bf16.msra.mxu0 %v353
        %371 = vmatprep.subr.bf16.mxu0 0
        %372 = vmatpush1.bf16.msra.mxu0 %v354
        %373 = vmatprep.subr.bf16.mxu0 0
        %374 = vmatpush1.bf16.msra.mxu0 %v355
        %375 = vmatprep.subr.bf16.mxu0 0
        %376 = vmatpush1.bf16.msra.mxu0 %v356
        %377 = vmatprep.subr.bf16.mxu0 0
        %378 = vmatpush1.bf16.msra.mxu0 %v357
        %379 = vmatprep.subr.bf16.mxu0 0
        %380 = vmatpush1.bf16.msra.mxu0 %v358
        %381 = vmatprep.subr.bf16.mxu0 0
        %382 = vmatpush1.bf16.msra.mxu0 %v359
        %383 = vmatprep.subr.bf16.mxu0 0
        %384 = vmatpush1.bf16.msra.mxu0 %v360
        %385 = vmatprep.subr.bf16.mxu0 0
        %386 = vmatpush1.bf16.msra.mxu0 0
        %387 = vmatprep.subr.bf16.mxu0 0
        %388 = vmatpush1.bf16.msra.mxu0 0
        %389 = vmatprep.subr.bf16.mxu0 0
        %390 = vmatpush1.bf16.msra.mxu0 0
        %391 = vmatprep.subr.bf16.mxu0 0
        %392 = vmatpush1.bf16.msra.mxu0 0
        %393 = vmatprep.subr.bf16.mxu0 0
        %394 = vmatpush1.bf16.msra.mxu0 0
        %395 = vmatprep.subr.bf16.mxu0 0
        %396 = vmatpush1.bf16.msra.mxu0 0
        %397 = vmatprep.subr.bf16.mxu0 0
        %398 = vmatpush1.bf16.msra.mxu0 0
        %399 = vmatprep.subr.bf16.mxu0 0
        %400 = vmatpush1.bf16.msra.mxu0 0
        %401 = vmatprep.mubr.bf16.mxu0 0
        %402 = vmatmul.mubr.bf16.gmra.mrb[0].mxu0 %v312
        %v403 = vpop.f32.mrb[0].mxu0
        %v404 = vadd.f32 %v319, %v403
        %v405 = vpop.f32.mrb[0].mxu0
        %v406 = vpop.f32.mrb[0].mxu0
        %v407 = vpop.f32.mrb[0].mxu0
        %408 = vdwg.mxu0
        %v409 = vmul.f32 %v404, %v404
        %410 = vadd.xlane.f32.xlu0 %v409
        %v411 = vpop.xlane.xlu0 %410
        %v412 = vsub.f32 %v411, %v409
        %v413 = vadd.f32 %v412, 1.0
        %v414 = vrsqrt.pop %v413
        %v415 = vmul.f32 %v413, %v414
        %vm416 = vcmp.eq.f32.partialorder %v413, inf
        %v417 = vsel %vm416, %v413, %v415
        %vm418 = vcmp.eq.f32.partialorder %v413, 0.0
        %v419 = vand.u32 %v413, 2147483648
        %v420 = vsel %vm418, %v419, %v417
        %422 = vset.pattern.permute.xlu0 0
        %423 = vperm.xlu0 %422, %v420
        %v424 = vpop.permute.xlu0 %423
        %v426 = vsel %vm288, %v424, %v404
        %427 = vst [vmem:[%s200] sm:$0xff] %v426
        %s428 = sand.u32 %s97, 1
        %s429 = scalar_lea.sflag [#allocation4], %s428
        %s430 = sand.u32 %s97, 1
        %s431 = smul.addr %s430, 8
        %s432 = scalar_lea.vmem [#allocation7], %s431
        // Predicated region
        $region41: #{tpu_custom_call.1} parent=31 // pred_check
          %p433 = pneg %p107
        $region42: #{tpu_custom_call.1} parent=31 // pred_check_branch
          %435 = sbr.rel (%p433) target = $region44
        $region43: #{tpu_custom_call.1} parent=31 // pred_region
          %s437 = ssub.s32 128, 128
          %438 = vsyncadd %s429, %s437
          %s439 = smul.addr %s21, 128
          %s440 = scalar_lea.hbm %s3, %s439
          %s442 = sshll.u32 %s432, 4
          %s443 = int_to_ptr.vmem [resolvable:$true] %s442
          %445 = dma.vmem_to_hbm [thread:$0]  %s443, 128, %s440, %s429
        $region44: #{tpu_custom_call.1} parent=31 // pred_fallthru
          _
      $region32: #{tpu_custom_call.1} parent=5 // pred_fallthru
        _
      %p446 = scmp.le.s32.totalorder 2, %s16
      // Predicated region
      $region45: #{tpu_custom_call.1} parent=5 // pred_check
        %p447 = pneg %p446
      $region46: #{tpu_custom_call.1} parent=5 // pred_check_branch
        %449 = sbr.rel (%p447) target = $region48
      $region47: #{tpu_custom_call.1} parent=5 // pred_region
        %s450 = ssub.s32 %s16, 2
        // Predicated region
        $region49: #{tpu_custom_call.1} parent=47 // pred_check
          %p451 = pneg %p113
        $region50: #{tpu_custom_call.1} parent=47 // pred_check_branch
          %453 = sbr.rel (%p451) target = $region52
        $region51: #{tpu_custom_call.1} parent=47 // pred_region
          %s454 = sand.u32 %s98, 1
          %s455 = scalar_lea.sflag [#allocation4], %s454
          %s456 = sand.u32 %s98, 1
          %s457 = smul.addr %s456, 8
          %s458 = scalar_lea.vmem [#allocation7], %s457
          %459 = dma.done %s455, 128
        $region52: #{tpu_custom_call.1} parent=47 // pred_fallthru
          _
      $region48: #{tpu_custom_call.1} parent=5 // pred_fallthru
        _
    $region6: #{tpu_custom_call.1} parent=1 // loop_footer
      %s20 = sadd.s32 1, %s16
    $region7: #{tpu_custom_call.1} parent=1 // loop_footer_branch
      %15 = sbr.rel target = $region3
    $region8: #{tpu_custom_call.1} parent=1 // loop_exit
      _
    %460 = vsyncpa [#allocation3], 1
    %s461 = scalar_lea.sflag [#allocation3], 1
    %462 = vsyncpa %s461, 1
    %463 = vsyncpa [#allocation6], 1
    %464 = vsyncpa [#allocation4], 1
    %s465 = scalar_lea.sflag [#allocation4], 1
    %466 = vsyncpa %s465, 1

</llo_original>
